<compile_context>
chip_gen: v6e
topology: v6e:2x2x1
jax: 0.10.0
libtpu: 0.0.40
codegen_flags: <defaults>
</compile_context>

<pallas_src>
import functools

import jax
import jax.numpy as jnp
from jax.experimental import pallas as pl
from jax.experimental.pallas import tpu as pltpu


def tp_linear_kernel(x_ref, w_ref, b_ref, o_ref):
    """x_ref: (tm, tk) bf16 | w_ref: (tn, tk) bf16 | b_ref: (1, tn) f32
       o_ref: (tm, tn) f32  -- doubles as the K-reduction accumulator."""
    k = pl.program_id(2)

    @pl.when(k == 0)
    def _init():
        # Bias is added exactly once per output tile == the rank-0 bias add
        # performed after the emulated dist.reduce(SUM).
        o_ref[...] = jnp.broadcast_to(b_ref[...], o_ref.shape)

    # (tm, tk) . (tn, tk) contracting the last dims -> (tm, tn); f32 accumulate
    # on the MXU, summed into the resident output block across the K axis.
    o_ref[...] += jax.lax.dot_general(
        x_ref[...],
        w_ref[...],
        dimension_numbers=(((1,), (1,)), ((), ())),
        preferred_element_type=jnp.float32,
    )


def prepare_tp_weights(per_rank_weights):
    """One-time (offline) rearrangement of the static per-rank nn.Linear
    weights (world_size, out_features, local_in) into the full
    (out_features, in_features) weight.  Weights are parameters, so in real use
    this happens once at init, not per forward call."""
    ws, out_f, local_in = per_rank_weights.shape
    return jnp.transpose(per_rank_weights, (1, 0, 2)).reshape(out_f, ws * local_in)


@functools.partial(jax.jit, static_argnames=("tm", "tn", "tk", "compute_dtype"))
def tp_linear(x, w_full, bias0, *, tm=128, tn=256, tk=256,
              compute_dtype=jnp.bfloat16):
    """x: (B, in_features) f32, w_full: (out_features, in_features) f32,
       bias0: (out_features,) f32.  Returns (B, out_features) f32."""
    B, K = x.shape
    N, K_w = w_full.shape
    assert K == K_w, (K, K_w)

    tm, tn, tk = min(tm, B), min(tn, N), min(tk, K)
    assert B % tm == 0 and N % tn == 0 and K % tk == 0, (
        "B / out_features / in_features must be multiples of the tile sizes "
        "(pad in the caller for ragged shapes)")

    # bf16 MXU operands (halves weight HBM traffic); accumulation stays f32.
    x_c = x.astype(compute_dtype)
    w_c = w_full.astype(compute_dtype)
    b2d = bias0.astype(jnp.float32).reshape(1, N)

    grid = (B // tm, N // tn, K // tk)
    return pl.pallas_call(
        tp_linear_kernel,
        out_shape=jax.ShapeDtypeStruct((B, N), jnp.float32),
        grid_spec=pltpu.PrefetchScalarGridSpec(
            num_scalar_prefetch=0,
            grid=grid,
            in_specs=[
                pl.BlockSpec((tm, tk), lambda i, j, k: (i, k)),   # x tile
                pl.BlockSpec((tn, tk), lambda i, j, k: (j, k)),   # weight tile
                pl.BlockSpec((1, tn), lambda i, j, k: (0, j)),    # bias tile
            ],
            out_specs=pl.BlockSpec((tm, tn), lambda i, j, k: (i, j)),
        ),
        compiler_params=pltpu.CompilerParams(
            # M/N parallel (megacore / v7x dual-TC), K is the reduction.
            dimension_semantics=("parallel", "parallel", "arbitrary"),
            vmem_limit_bytes=32 * 1024 * 1024,
        ),
    )(x_c, w_c, b2d)


if __name__ == "__main__":
    # Small but TPU-tile-friendly shapes consistent with the module.
    batch_size = 256
    in_features = 1024
    out_features = 512
    world_size = 4
    local_in = in_features // world_size

    key = jax.random.PRNGKey(0)
    kx, kw, kb = jax.random.split(key, 3)

    x = jax.random.normal(kx, (batch_size, in_features), dtype=jnp.float32)

    # Per-rank nn.Linear(local_in, out_features) params (torch-default-like
    # uniform(+-1/sqrt(local_in)) init); only rank 0's bias is ever used.
    bound = 1.0 / (local_in ** 0.5)
    per_rank_w = jax.random.uniform(
        kw, (world_size, out_features, local_in),
        minval=-bound, maxval=bound, dtype=jnp.float32)
    bias0 = jax.random.uniform(
        kb, (out_features,), minval=-bound, maxval=bound, dtype=jnp.float32)

    # Static one-time weight concat (rank shards side by side along K).
    w_full = prepare_tp_weights(per_rank_w)

    out = jax.block_until_ready(tp_linear(x, w_full, bias0))
    assert out.shape == (batch_size, out_features)

    # Reference 1: same bf16-compute / f32-accumulate math as the kernel.
    ref_bf16 = jax.lax.dot_general(
        x.astype(jnp.bfloat16), w_full.astype(jnp.bfloat16),
        dimension_numbers=(((1,), (1,)), ((), ())),
        preferred_element_type=jnp.float32) + bias0
    assert jnp.allclose(out, ref_bf16, atol=1e-3, rtol=1e-3), (
        float(jnp.max(jnp.abs(out - ref_bf16))))

    # Reference 2: the module's semantics, sum_r (x_chunk_r @ W_r^T) + bias_0,
    # in f32 (loose tolerance for the bf16 MXU inputs).
    x_chunks = x.reshape(batch_size, world_size, local_in)
    ref_f32 = jnp.einsum("brk,rok->bo", x_chunks, per_rank_w) + bias0
    assert jnp.allclose(out, ref_f32, atol=5e-2, rtol=5e-2), (
        float(jnp.max(jnp.abs(out - ref_f32))))

    print("KERNEL_OK")
</pallas_src>

<mosaic_0001>
module attributes {stable_mosaic.version = 11 : i64} {
  func.func @tp_linear_kernel(%arg0: i32, %arg1: i32, %arg2: i32, %arg3: memref<128x256xbf16, #tpu.memory_space<vmem>>, %arg4: memref<256x256xbf16, #tpu.memory_space<vmem>>, %arg5: memref<1x256xf32, #tpu.memory_space<vmem>>, %arg6: memref<128x256xf32, #tpu.memory_space<vmem>>) attributes {dimension_semantics = [#tpu.dimension_semantics<parallel>, #tpu.dimension_semantics<parallel>, #tpu.dimension_semantics<arbitrary>], iteration_bounds = array<i64: 2, 2, 4>, scalar_prefetch = 0 : i64, scratch_operands = 0 : i64, tpu.core_type = #tpu.core_type<tc>, window_params = [{transform_indices = @transform_0, window_bounds = array<i64: 128, 256>}, {transform_indices = @transform_1, window_bounds = array<i64: 256, 256>}, {transform_indices = @transform_2, window_bounds = array<i64: 1, 256>}, {transform_indices = @transform_3, window_bounds = array<i64: 128, 256>}]} {
    %c0_i32 = arith.constant 0 : i32
    %0 = arith.cmpi eq, %arg2, %c0_i32 : i32
    %1 = arith.extui %0 : i1 to i32
    %c0_i32_0 = arith.constant 0 : i32
    %2 = arith.cmpi ne, %1, %c0_i32_0 : i32
    scf.if %2 {
      %c0_8 = arith.constant 0 : index
      %c0_9 = arith.constant 0 : index
      %9 = vector.load %arg5[%c0_8, %c0_9] : memref<1x256xf32, #tpu.memory_space<vmem>>, vector<1x256xf32>
      %10 = vector.shape_cast %9 : vector<1x256xf32> to vector<1x256xf32>
      %11 = vector.broadcast %10 : vector<1x256xf32> to vector<128x256xf32>
      %c0_10 = arith.constant 0 : index
      %c0_11 = arith.constant 0 : index
      %12 = vector.load %arg6[%c0_10, %c0_11] : memref<128x256xf32, #tpu.memory_space<vmem>>, vector<128x256xf32>
      tpu.vector_store %arg6[%c0_10, %c0_11], %11 {strides = array<i32>} : memref<128x256xf32, #tpu.memory_space<vmem>>, vector<128x256xf32>,
    } else {
    }
    %c0 = arith.constant 0 : index
    %c0_1 = arith.constant 0 : index
    %3 = vector.load %arg6[%c0, %c0_1] : memref<128x256xf32, #tpu.memory_space<vmem>>, vector<128x256xf32>
    %c0_2 = arith.constant 0 : index
    %c0_3 = arith.constant 0 : index
    %4 = vector.load %arg3[%c0_2, %c0_3] : memref<128x256xbf16, #tpu.memory_space<vmem>>, vector<128x256xbf16>
    %c0_4 = arith.constant 0 : index
    %c0_5 = arith.constant 0 : index
    %5 = vector.load %arg4[%c0_4, %c0_5] : memref<256x256xbf16, #tpu.memory_space<vmem>>, vector<256x256xbf16>
    %cst = arith.constant dense<0.000000e+00> : vector<128x256xf32>
    %6 = tpu.matmul %4, %5, %cst {dimension_numbers = #tpu.dot_dimension_numbers<[1], [1], [0], [0], [0, 0, 1, 0], [], []>} : vector<128x256xbf16>, vector<256x256xbf16>, vector<128x256xf32> -> vector<128x256xf32>
    %7 = arith.addf %3, %6 : vector<128x256xf32>
    %c0_6 = arith.constant 0 : index
    %c0_7 = arith.constant 0 : index
    %8 = vector.load %arg6[%c0_6, %c0_7] : memref<128x256xf32, #tpu.memory_space<vmem>>, vector<128x256xf32>
    tpu.vector_store %arg6[%c0_6, %c0_7], %7 {strides = array<i32>} : memref<128x256xf32, #tpu.memory_space<vmem>>, vector<128x256xf32>,
    return
  }
  func.func @transform_0(%arg0: i32, %arg1: i32, %arg2: i32) -> (i32, i32) {
    %c0_i32 = arith.constant 0 : i32
    return %arg0, %arg2 : i32, i32
  }
  func.func @transform_1(%arg0: i32, %arg1: i32, %arg2: i32) -> (i32, i32) {
    %c0_i32 = arith.constant 0 : i32
    return %arg1, %arg2 : i32, i32
  }
  func.func @transform_2(%arg0: i32, %arg1: i32, %arg2: i32) -> (i32, i32) {
    %c0_i32 = arith.constant 0 : i32
    %c0_i32_0 = arith.constant 0 : i32
    return %c0_i32, %arg1 : i32, i32
  }
  func.func @transform_3(%arg0: i32, %arg1: i32, %arg2: i32) -> (i32, i32) {
    %c0_i32 = arith.constant 0 : i32
    return %arg0, %arg1 : i32, i32
  }
}

</mosaic_0001>

<llo_original>
// kernel: tp_linear.1
$region0: #{tp_linear.1}
  #allocation0 [shape = 'u32[]', space=smem, size = 0x4, offset = 0x4, fixed_abs, tag = 'smem constant byte address 0x4 - core index']
  #allocation1 [shape = 'u32[144,128]{1,0:T(1,128)}', space=vmem, size = 0x12000, scoped, tag = 'internal scratch']
  %s0 = inlined_call_operand.vmem [shape: bf16[256,1024], index: 0, kind: input, shape index: {}]
  %s1 = inlined_call_operand.vmem [shape: bf16[512,1024], index: 1, kind: input, shape index: {}]
  %s2 = inlined_call_operand.vmem [shape: f32[1,512], index: 2, kind: input, shape index: {}]
  %s3 = inlined_call_operand.hbm [shape: f32[256,512], index: 3, kind: output, shape index: {}]
  %s4 = sld [smem:[#allocation0]]
  $region125: #{tp_linear.1} parent=0
    _
  %s6 = ssub.s32 1, %s4
  %s7 = scalar_select 0, %s6, %s4
  $region1: #{tp_linear.1} parent=0
    #allocation2 [shape = 'u8[131072]{0}', space=vmem, size = 0x20000, scoped, tag = 'input window, operand 0']
    #allocation3 [shape = 'u8[262144]{0}', space=vmem, size = 0x40000, scoped, tag = 'input window, operand 1']
    #allocation4 [shape = 'u8[262144]{0}', space=vmem, size = 0x40000, scoped, tag = 'output window, operand 0']
    #allocation5 [shape = 's32[2]{0}', space=sflag, size = 0x8, scoped, tag = 'scoped memory for tp_linear.1']
    %8 = vsyncpa [#allocation5], 0
    %s9 = scalar_lea.sflag [#allocation5], 1
    %10 = vsyncpa %s9, 0
    loop: start=0, step=1, limit=18
    $region2: #{tp_linear.1} parent=1 // loop_pre_header
      _
    $region3: #{tp_linear.1} parent=1 // loop_header
      %s12 = sphi 0, %s16
      %p13 = scmp.ge.s32.totalorder %s12, 18
      %s19 = sphi 0, %s38
      %s20 = sphi 0, %s34
      %s21 = sphi 0, %s30
      %s22 = sphi 0, %s19
      %s23 = sphi 0, %s20
      %s24 = sphi 0, %s21
      %s25 = sphi 0, %s22
      %s26 = sphi 0, %s23
      %s27 = sphi 0, %s24
      %s43 = sphi 0, %s45
      %s46 = sphi 0, %s43
      %s47 = sphi 0, %s46
      %s63 = sphi 0, %s47
      %s71 = sphi 0, %s73
      %s74 = sphi 0, %s71
      %s75 = sphi 0, %s74
      %s91 = sphi 0, %s75
      %s97 = sphi 0, %s99
      %s100 = sphi 0, %s97
      %s101 = sphi 0, %s100
      %s117 = sphi 0, %s101
      %s125 = sphi 0, %s127
      %s128 = sphi 0, %s125
      %s129 = sphi 0, %s128
      %s145 = sphi 0, %s129
    $region4: #{tp_linear.1} parent=1 // loop_header_branch
      %15 = sbr.rel (%p13) target = $region8
    $region5: #{tp_linear.1} parent=1 // loop_body
      %s17 = ssub.s32 %s12, 1
      %s18 = ssub.s32 %s12, 2
      %s28 = sadd.s32 1, %s21
      %p29 = scmp.ge.s32.totalorder %s28, 4
      %s30 = scalar_select %p29, 0, %s28
      %s31 = sadd.s32 1, %s20
      %s32 = scalar_select %p29, %s31, %s20
      %p33 = scmp.ge.s32.totalorder %s32, 2
      %s34 = scalar_select %p33, 0, %s32
      %s35 = sadd.s32 1, %s19
      %s36 = scalar_select %p33, %s35, %s19
      %p37 = scmp.ge.s32.totalorder %s36, 2
      %s38 = scalar_select %p37, 0, %s36
      %s39 = ssub.s32 %s19, %s38
      %s40 = ssub.s32 %s21, %s30
      %s41 = sor.u32 %s39, %s40
      %p42 = scmp.eq.s32.totalorder %s41, 0
      %s44 = sadd.s32 %s43, 1
      %s45 = scalar_select %p42, %s43, %s44
      %p48 = pneg %p42
      %p49 = scmp.eq.s32.totalorder %s12, 15
      %p50 = por %p48, %p49
      %p51 = scmp.ne.s32.totalorder %s43, %s46
      %p52 = scmp.eq.s32.totalorder %s12, 0
      %p53 = por %p51, %p52
      %p54 = scmp.ne.s32.totalorder %s43, %s46
      %p55 = scmp.eq.s32.totalorder %s17, 15
      %p56 = por %p54, %p55
      %p57 = scmp.ne.s32.totalorder %s46, %s47
      %p58 = scmp.eq.s32.totalorder %s17, 0
      %p59 = por %p57, %p58
      %p60 = scmp.ne.s32.totalorder %s46, %s47
      %p61 = scmp.eq.s32.totalorder %s18, 15
      %p62 = por %p60, %p61
      %p64 = scmp.ne.s32.totalorder %s47, %s63
      %p65 = scmp.eq.s32.totalorder %s18, 0
      %p66 = por %p64, %p65
      %s67 = ssub.s32 %s20, %s34
      %s68 = ssub.s32 %s21, %s30
      %s69 = sor.u32 %s67, %s68
      %p70 = scmp.eq.s32.totalorder %s69, 0
      %s72 = sadd.s32 %s71, 1
      %s73 = scalar_select %p70, %s71, %s72
      %p76 = pneg %p70
      %p77 = scmp.eq.s32.totalorder %s12, 15
      %p78 = por %p76, %p77
      %p79 = scmp.ne.s32.totalorder %s71, %s74
      %p80 = scmp.eq.s32.totalorder %s12, 0
      %p81 = por %p79, %p80
      %p82 = scmp.ne.s32.totalorder %s71, %s74
      %p83 = scmp.eq.s32.totalorder %s17, 15
      %p84 = por %p82, %p83
      %p85 = scmp.ne.s32.totalorder %s74, %s75
      %p86 = scmp.eq.s32.totalorder %s17, 0
      %p87 = por %p85, %p86
      %p88 = scmp.ne.s32.totalorder %s74, %s75
      %p89 = scmp.eq.s32.totalorder %s18, 15
      %p90 = por %p88, %p89
      %p92 = scmp.ne.s32.totalorder %s75, %s91
      %p93 = scmp.eq.s32.totalorder %s18, 0
      %p94 = por %p92, %p93
      %s95 = ssub.s32 %s20, %s34
      %p96 = scmp.eq.s32.totalorder %s95, 0
      %s98 = sadd.s32 %s97, 1
      %s99 = scalar_select %p96, %s97, %s98
      %p102 = pneg %p96
      %p103 = scmp.eq.s32.totalorder %s12, 15
      %p104 = por %p102, %p103
      %p105 = scmp.ne.s32.totalorder %s97, %s100
      %p106 = scmp.eq.s32.totalorder %s12, 0
      %p107 = por %p105, %p106
      %p108 = scmp.ne.s32.totalorder %s97, %s100
      %p109 = scmp.eq.s32.totalorder %s17, 15
      %p110 = por %p108, %p109
      %p111 = scmp.ne.s32.totalorder %s100, %s101
      %p112 = scmp.eq.s32.totalorder %s17, 0
      %p113 = por %p111, %p112
      %p114 = scmp.ne.s32.totalorder %s100, %s101
      %p115 = scmp.eq.s32.totalorder %s18, 15
      %p116 = por %p114, %p115
      %p118 = scmp.ne.s32.totalorder %s101, %s117
      %p119 = scmp.eq.s32.totalorder %s18, 0
      %p120 = por %p118, %p119
      %s121 = ssub.s32 %s19, %s38
      %s122 = ssub.s32 %s20, %s34
      %s123 = sor.u32 %s121, %s122
      %p124 = scmp.eq.s32.totalorder %s123, 0
      %s126 = sadd.s32 %s125, 1
      %s127 = scalar_select %p124, %s125, %s126
      %p130 = pneg %p124
      %p131 = scmp.eq.s32.totalorder %s12, 15
      %p132 = por %p130, %p131
      %p133 = scmp.ne.s32.totalorder %s125, %s128
      %p134 = scmp.eq.s32.totalorder %s12, 0
      %p135 = por %p133, %p134
      %p136 = scmp.ne.s32.totalorder %s125, %s128
      %p137 = scmp.eq.s32.totalorder %s17, 15
      %p138 = por %p136, %p137
      %p139 = scmp.ne.s32.totalorder %s128, %s129
      %p140 = scmp.eq.s32.totalorder %s17, 0
      %p141 = por %p139, %p140
      %p142 = scmp.ne.s32.totalorder %s128, %s129
      %p143 = scmp.eq.s32.totalorder %s18, 15
      %p144 = por %p142, %p143
      %p146 = scmp.ne.s32.totalorder %s129, %s145
      %p147 = scmp.eq.s32.totalorder %s18, 0
      %p148 = por %p146, %p147
      %p149 = scmp.le.s32.totalorder 1, %s12
      %p150 = scmp.lt.s32.totalorder %s12, 17
      %p151 = pnand %p149, %p150
      %p152 = pneg %p151
      // Predicated region
      $region9: #{tp_linear.1} parent=5 // pred_check
        _
      $region10: #{tp_linear.1} parent=5 // pred_check_branch
        %154 = sbr.rel (%p151) target = $region12
      $region11: #{tp_linear.1} parent=5 // pred_region
        %s155 = ssub.s32 %s12, 1
      $region12: #{tp_linear.1} parent=5 // pred_fallthru
        _
      %p156 = scmp.lt.s32.totalorder %s12, 16
      // Predicated region
      $region13: #{tp_linear.1} parent=5 // pred_check
        %p157 = pneg %p156
      $region14: #{tp_linear.1} parent=5 // pred_check_branch
        %159 = sbr.rel (%p157) target = $region16
      $region15: #{tp_linear.1} parent=5 // pred_region
        // Predicated region
        $region17: #{tp_linear.1} parent=15 // pred_check
          %p160 = pneg %p53
        $region18: #{tp_linear.1} parent=15 // pred_check_branch
          %162 = sbr.rel (%p160) target = $region20
        $region19: #{tp_linear.1} parent=15 // pred_region
          %s163 = sand.u32 %s43, 1
          %s164 = sand.u32 %s43, 1
          %s165 = smul.addr %s164, 128
          %s166 = scalar_lea.vmem [#allocation2], %s165
          %s167 = smul.u32 16, %s19
          %s168 = smul.u32 2, %s21
          %s169 = smul.addr %s167, 8
          %s170 = sadd.s32 %s168, %s169
          %s171 = smul.addr %s170, 4
          %s172 = scalar_lea.vmem %s0, %s171
          // Predicated region
          $region21: #{tp_linear.1} parent=19 // pred_check
            _
          $region22: #{tp_linear.1} parent=19 // pred_check_branch
            %174 = sbr.rel (0) target = $region24
          $region23: #{tp_linear.1} parent=19 // pred_region
            // Predicated region
            $region25: #{tp_linear.1} parent=23 // pred_check
              _
            $region26: #{tp_linear.1} parent=23 // pred_check_branch
              %176 = sbr.rel (0) target = $region28
            $region27: #{tp_linear.1} parent=23 // pred_region
              // Predicated region
              $region40: #{tp_linear.1} parent=27 // pred_check
                _
              $region41: #{tp_linear.1} parent=27 // pred_check_branch
                %222 = sbr.rel (0) target = $region43
              $region42: #{tp_linear.1} parent=27 // pred_region
                loop: start=0, step=1, limit=1
                $region44: #{tp_linear.1} parent=42 // loop_pre_header
                  _
                $region45: #{tp_linear.1} parent=42 // loop_header
                  %s224 = sphi 0, %s228
                  %p225 = scmp.ge.s32.totalorder %s224, 1
                  %s229 = sphi %s172, %s172
                  %s230 = sphi %s166, %s166
                $region46: #{tp_linear.1} parent=42 // loop_header_branch
                  %227 = sbr.rel (%p225) target = $region50
                $region47: #{tp_linear.1} parent=42 // loop_body
                  %v231 = vld [vmem:[%s229] sm:$0xff]
                  %232 = vst [vmem:[%s230] sm:$0xff] %v231
                  %v233 = vld [vmem:[%s229 + $0x20] sm:$0xff]
                  %234 = vst [vmem:[%s230 + $0x8] sm:$0xff] %v233
                  %v235 = vld [vmem:[%s229 + $0x40] sm:$0xff]
                  %236 = vst [vmem:[%s230 + $0x10] sm:$0xff] %v235
                  %v237 = vld [vmem:[%s229 + $0x60] sm:$0xff]
                  %238 = vst [vmem:[%s230 + $0x18] sm:$0xff] %v237
                  %v239 = vld [vmem:[%s229 + $0x80] sm:$0xff]
                  %240 = vst [vmem:[%s230 + $0x20] sm:$0xff] %v239
                  %v241 = vld [vmem:[%s229 + $0xa0] sm:$0xff]
                  %242 = vst [vmem:[%s230 + $0x28] sm:$0xff] %v241
                  %v243 = vld [vmem:[%s229 + $0xc0] sm:$0xff]
                  %244 = vst [vmem:[%s230 + $0x30] sm:$0xff] %v243
                  %v245 = vld [vmem:[%s229 + $0xe0] sm:$0xff]
                  %246 = vst [vmem:[%s230 + $0x38] sm:$0xff] %v245
                  %v247 = vld [vmem:[%s229 + $0x100] sm:$0xff]
                  %248 = vst [vmem:[%s230 + $0x40] sm:$0xff] %v247
                  %v249 = vld [vmem:[%s229 + $0x120] sm:$0xff]
                  %250 = vst [vmem:[%s230 + $0x48] sm:$0xff] %v249
                  %v251 = vld [vmem:[%s229 + $0x140] sm:$0xff]
                  %252 = vst [vmem:[%s230 + $0x50] sm:$0xff] %v251
                  %v253 = vld [vmem:[%s229 + $0x160] sm:$0xff]
                  %254 = vst [vmem:[%s230 + $0x58] sm:$0xff] %v253
                  %v255 = vld [vmem:[%s229 + $0x180] sm:$0xff]
                  %256 = vst [vmem:[%s230 + $0x60] sm:$0xff] %v255
                  %v257 = vld [vmem:[%s229 + $0x1a0] sm:$0xff]
                  %258 = vst [vmem:[%s230 + $0x68] sm:$0xff] %v257
                  %v259 = vld [vmem:[%s229 + $0x1c0] sm:$0xff]
                  %260 = vst [vmem:[%s230 + $0x70] sm:$0xff] %v259
                  %v261 = vld [vmem:[%s229 + $0x1e0] sm:$0xff]
                  %262 = vst [vmem:[%s230 + $0x78] sm:$0xff] %v261
                $region48: #{tp_linear.1} parent=42 // loop_footer
                  %s228 = sadd.s32 1, %s224
                $region49: #{tp_linear.1} parent=42 // loop_footer_branch
                  %223 = sbr.rel target = $region45
                $region50: #{tp_linear.1} parent=42 // loop_exit
                  _
              $region43: #{tp_linear.1} parent=27 // pred_fallthru
                _
              // Predicated region
              $region51: #{tp_linear.1} parent=27 // pred_check
                _
              $region52: #{tp_linear.1} parent=27 // pred_check_branch
                %264 = sbr.rel target = $region54
              $region53: #{tp_linear.1} parent=27 // pred_region
                _
              $region54: #{tp_linear.1} parent=27 // pred_fallthru
                _
            $region28: #{tp_linear.1} parent=23 // pred_fallthru
              _
            // Predicated region
            $region29: #{tp_linear.1} parent=23 // pred_check
              _
            $region30: #{tp_linear.1} parent=23 // pred_check_branch
              %178 = sbr.rel target = $region32
            $region31: #{tp_linear.1} parent=23 // pred_region
              %s180 = ssub.s32 256, 1
              loop: start=0, step=1, limit=1
              $region33: #{tp_linear.1} parent=31 // loop_pre_header
                _
              $region34: #{tp_linear.1} parent=31 // loop_header
                %s182 = sphi 0, %s186
                %p183 = scmp.ge.s32.totalorder %s182, 1
                %s187 = sphi %s172, %s172
                %s188 = sphi %s166, %s166
              $region35: #{tp_linear.1} parent=31 // loop_header_branch
                %185 = sbr.rel (%p183) target = $region39
              $region36: #{tp_linear.1} parent=31 // loop_body
                %v189 = vld [vmem:[%s187] sm:%s180]
                %190 = vst [vmem:[%s188] sm:%s180] %v189
                %v191 = vld [vmem:[%s187 + $0x20] sm:%s180]
                %192 = vst [vmem:[%s188 + $0x8] sm:%s180] %v191
                %v193 = vld [vmem:[%s187 + $0x40] sm:%s180]
                %194 = vst [vmem:[%s188 + $0x10] sm:%s180] %v193
                %v195 = vld [vmem:[%s187 + $0x60] sm:%s180]
                %196 = vst [vmem:[%s188 + $0x18] sm:%s180] %v195
                %v197 = vld [vmem:[%s187 + $0x80] sm:%s180]
                %198 = vst [vmem:[%s188 + $0x20] sm:%s180] %v197
                %v199 = vld [vmem:[%s187 + $0xa0] sm:%s180]
                %200 = vst [vmem:[%s188 + $0x28] sm:%s180] %v199
                %v201 = vld [vmem:[%s187 + $0xc0] sm:%s180]
                %202 = vst [vmem:[%s188 + $0x30] sm:%s180] %v201
                %v203 = vld [vmem:[%s187 + $0xe0] sm:%s180]
                %204 = vst [vmem:[%s188 + $0x38] sm:%s180] %v203
                %v205 = vld [vmem:[%s187 + $0x100] sm:%s180]
                %206 = vst [vmem:[%s188 + $0x40] sm:%s180] %v205
                %v207 = vld [vmem:[%s187 + $0x120] sm:%s180]
                %208 = vst [vmem:[%s188 + $0x48] sm:%s180] %v207
                %v209 = vld [vmem:[%s187 + $0x140] sm:%s180]
                %210 = vst [vmem:[%s188 + $0x50] sm:%s180] %v209
                %v211 = vld [vmem:[%s187 + $0x160] sm:%s180]
                %212 = vst [vmem:[%s188 + $0x58] sm:%s180] %v211
                %v213 = vld [vmem:[%s187 + $0x180] sm:%s180]
                %214 = vst [vmem:[%s188 + $0x60] sm:%s180] %v213
                %v215 = vld [vmem:[%s187 + $0x1a0] sm:%s180]
                %216 = vst [vmem:[%s188 + $0x68] sm:%s180] %v215
                %v217 = vld [vmem:[%s187 + $0x1c0] sm:%s180]
                %218 = vst [vmem:[%s188 + $0x70] sm:%s180] %v217
                %v219 = vld [vmem:[%s187 + $0x1e0] sm:%s180]
                %220 = vst [vmem:[%s188 + $0x78] sm:%s180] %v219
              $region37: #{tp_linear.1} parent=31 // loop_footer
                %s186 = sadd.s32 1, %s182
              $region38: #{tp_linear.1} parent=31 // loop_footer_branch
                %181 = sbr.rel target = $region34
              $region39: #{tp_linear.1} parent=31 // loop_exit
                _
            $region32: #{tp_linear.1} parent=23 // pred_fallthru
              _
          $region24: #{tp_linear.1} parent=19 // pred_fallthru
            _
          %265 = vnop
        $region20: #{tp_linear.1} parent=15 // pred_fallthru
          _
        // Predicated region
        $region55: #{tp_linear.1} parent=15 // pred_check
          %p266 = pneg %p81
        $region56: #{tp_linear.1} parent=15 // pred_check_branch
          %268 = sbr.rel (%p266) target = $region58
        $region57: #{tp_linear.1} parent=15 // pred_region
          %s269 = sand.u32 %s71, 1
          %s270 = sand.u32 %s71, 1
          %s271 = smul.addr %s270, 256
          %s272 = scalar_lea.vmem [#allocation3], %s271
          %s273 = smul.u32 32, %s20
          %s274 = smul.u32 2, %s21
          %s275 = smul.addr %s273, 8
          %s276 = sadd.s32 %s274, %s275
          %s277 = smul.addr %s276, 4
          %s278 = scalar_lea.vmem %s1, %s277
          // Predicated region
          $region59: #{tp_linear.1} parent=57 // pred_check
            _
          $region60: #{tp_linear.1} parent=57 // pred_check_branch
            %280 = sbr.rel (0) target = $region62
          $region61: #{tp_linear.1} parent=57 // pred_region
            // Predicated region
            $region63: #{tp_linear.1} parent=61 // pred_check
              _
            $region64: #{tp_linear.1} parent=61 // pred_check_branch
              %282 = sbr.rel (0) target = $region66
            $region65: #{tp_linear.1} parent=61 // pred_region
              // Predicated region
              $region78: #{tp_linear.1} parent=65 // pred_check
                _
              $region79: #{tp_linear.1} parent=65 // pred_check_branch
                %360 = sbr.rel (0) target = $region81
              $region80: #{tp_linear.1} parent=65 // pred_region
                loop: start=0, step=1, limit=1
                $region82: #{tp_linear.1} parent=80 // loop_pre_header
                  _
                $region83: #{tp_linear.1} parent=80 // loop_header
                  %s362 = sphi 0, %s366
                  %p363 = scmp.ge.s32.totalorder %s362, 1
                  %s367 = sphi %s278, %s278
                  %s368 = sphi %s272, %s272
                $region84: #{tp_linear.1} parent=80 // loop_header_branch
                  %365 = sbr.rel (%p363) target = $region88
                $region85: #{tp_linear.1} parent=80 // loop_body
                  %v369 = vld [vmem:[%s367] sm:$0xff]
                  %370 = vst [vmem:[%s368] sm:$0xff] %v369
                  %v371 = vld [vmem:[%s367 + $0x20] sm:$0xff]
                  %372 = vst [vmem:[%s368 + $0x8] sm:$0xff] %v371
                  %v373 = vld [vmem:[%s367 + $0x40] sm:$0xff]
                  %374 = vst [vmem:[%s368 + $0x10] sm:$0xff] %v373
                  %v375 = vld [vmem:[%s367 + $0x60] sm:$0xff]
                  %376 = vst [vmem:[%s368 + $0x18] sm:$0xff] %v375
                  %v377 = vld [vmem:[%s367 + $0x80] sm:$0xff]
                  %378 = vst [vmem:[%s368 + $0x20] sm:$0xff] %v377
                  %v379 = vld [vmem:[%s367 + $0xa0] sm:$0xff]
                  %380 = vst [vmem:[%s368 + $0x28] sm:$0xff] %v379
                  %v381 = vld [vmem:[%s367 + $0xc0] sm:$0xff]
                  %382 = vst [vmem:[%s368 + $0x30] sm:$0xff] %v381
                  %v383 = vld [vmem:[%s367 + $0xe0] sm:$0xff]
                  %384 = vst [vmem:[%s368 + $0x38] sm:$0xff] %v383
                  %v385 = vld [vmem:[%s367 + $0x100] sm:$0xff]
                  %386 = vst [vmem:[%s368 + $0x40] sm:$0xff] %v385
                  %v387 = vld [vmem:[%s367 + $0x120] sm:$0xff]
                  %388 = vst [vmem:[%s368 + $0x48] sm:$0xff] %v387
                  %v389 = vld [vmem:[%s367 + $0x140] sm:$0xff]
                  %390 = vst [vmem:[%s368 + $0x50] sm:$0xff] %v389
                  %v391 = vld [vmem:[%s367 + $0x160] sm:$0xff]
                  %392 = vst [vmem:[%s368 + $0x58] sm:$0xff] %v391
                  %v393 = vld [vmem:[%s367 + $0x180] sm:$0xff]
                  %394 = vst [vmem:[%s368 + $0x60] sm:$0xff] %v393
                  %v395 = vld [vmem:[%s367 + $0x1a0] sm:$0xff]
                  %396 = vst [vmem:[%s368 + $0x68] sm:$0xff] %v395
                  %v397 = vld [vmem:[%s367 + $0x1c0] sm:$0xff]
                  %398 = vst [vmem:[%s368 + $0x70] sm:$0xff] %v397
                  %v399 = vld [vmem:[%s367 + $0x1e0] sm:$0xff]
                  %400 = vst [vmem:[%s368 + $0x78] sm:$0xff] %v399
                  %v401 = vld [vmem:[%s367 + $0x200] sm:$0xff]
                  %402 = vst [vmem:[%s368 + $0x80] sm:$0xff] %v401
                  %v403 = vld [vmem:[%s367 + $0x220] sm:$0xff]
                  %404 = vst [vmem:[%s368 + $0x88] sm:$0xff] %v403
                  %v405 = vld [vmem:[%s367 + $0x240] sm:$0xff]
                  %406 = vst [vmem:[%s368 + $0x90] sm:$0xff] %v405
                  %v407 = vld [vmem:[%s367 + $0x260] sm:$0xff]
                  %408 = vst [vmem:[%s368 + $0x98] sm:$0xff] %v407
                  %v409 = vld [vmem:[%s367 + $0x280] sm:$0xff]
                  %410 = vst [vmem:[%s368 + $0xa0] sm:$0xff] %v409
                  %v411 = vld [vmem:[%s367 + $0x2a0] sm:$0xff]
                  %412 = vst [vmem:[%s368 + $0xa8] sm:$0xff] %v411
                  %v413 = vld [vmem:[%s367 + $0x2c0] sm:$0xff]
                  %414 = vst [vmem:[%s368 + $0xb0] sm:$0xff] %v413
                  %v415 = vld [vmem:[%s367 + $0x2e0] sm:$0xff]
                  %416 = vst [vmem:[%s368 + $0xb8] sm:$0xff] %v415
                  %v417 = vld [vmem:[%s367 + $0x300] sm:$0xff]
                  %418 = vst [vmem:[%s368 + $0xc0] sm:$0xff] %v417
                  %v419 = vld [vmem:[%s367 + $0x320] sm:$0xff]
                  %420 = vst [vmem:[%s368 + $0xc8] sm:$0xff] %v419
                  %v421 = vld [vmem:[%s367 + $0x340] sm:$0xff]
                  %422 = vst [vmem:[%s368 + $0xd0] sm:$0xff] %v421
                  %v423 = vld [vmem:[%s367 + $0x360] sm:$0xff]
                  %424 = vst [vmem:[%s368 + $0xd8] sm:$0xff] %v423
                  %v425 = vld [vmem:[%s367 + $0x380] sm:$0xff]
                  %426 = vst [vmem:[%s368 + $0xe0] sm:$0xff] %v425
                  %v427 = vld [vmem:[%s367 + $0x3a0] sm:$0xff]
                  %428 = vst [vmem:[%s368 + $0xe8] sm:$0xff] %v427
                  %v429 = vld [vmem:[%s367 + $0x3c0] sm:$0xff]
                  %430 = vst [vmem:[%s368 + $0xf0] sm:$0xff] %v429
                  %v431 = vld [vmem:[%s367 + $0x3e0] sm:$0xff]
                  %432 = vst [vmem:[%s368 + $0xf8] sm:$0xff] %v431
                $region86: #{tp_linear.1} parent=80 // loop_footer
                  %s366 = sadd.s32 1, %s362
                $region87: #{tp_linear.1} parent=80 // loop_footer_branch
                  %361 = sbr.rel target = $region83
                $region88: #{tp_linear.1} parent=80 // loop_exit
                  _
              $region81: #{tp_linear.1} parent=65 // pred_fallthru
                _
              // Predicated region
              $region89: #{tp_linear.1} parent=65 // pred_check
                _
              $region90: #{tp_linear.1} parent=65 // pred_check_branch
                %434 = sbr.rel target = $region92
              $region91: #{tp_linear.1} parent=65 // pred_region
                _
              $region92: #{tp_linear.1} parent=65 // pred_fallthru
                _
            $region66: #{tp_linear.1} parent=61 // pred_fallthru
              _
            // Predicated region
            $region67: #{tp_linear.1} parent=61 // pred_check
              _
            $region68: #{tp_linear.1} parent=61 // pred_check_branch
              %284 = sbr.rel target = $region70
            $region69: #{tp_linear.1} parent=61 // pred_region
              %s286 = ssub.s32 256, 1
              loop: start=0, step=1, limit=1
              $region71: #{tp_linear.1} parent=69 // loop_pre_header
                _
              $region72: #{tp_linear.1} parent=69 // loop_header
                %s288 = sphi 0, %s292
                %p289 = scmp.ge.s32.totalorder %s288, 1
                %s293 = sphi %s278, %s278
                %s294 = sphi %s272, %s272
              $region73: #{tp_linear.1} parent=69 // loop_header_branch
                %291 = sbr.rel (%p289) target = $region77
              $region74: #{tp_linear.1} parent=69 // loop_body
                %v295 = vld [vmem:[%s293] sm:%s286]
                %296 = vst [vmem:[%s294] sm:%s286] %v295
                %v297 = vld [vmem:[%s293 + $0x20] sm:%s286]
                %298 = vst [vmem:[%s294 + $0x8] sm:%s286] %v297
                %v299 = vld [vmem:[%s293 + $0x40] sm:%s286]
                %300 = vst [vmem:[%s294 + $0x10] sm:%s286] %v299
                %v301 = vld [vmem:[%s293 + $0x60] sm:%s286]
                %302 = vst [vmem:[%s294 + $0x18] sm:%s286] %v301
                %v303 = vld [vmem:[%s293 + $0x80] sm:%s286]
                %304 = vst [vmem:[%s294 + $0x20] sm:%s286] %v303
                %v305 = vld [vmem:[%s293 + $0xa0] sm:%s286]
                %306 = vst [vmem:[%s294 + $0x28] sm:%s286] %v305
                %v307 = vld [vmem:[%s293 + $0xc0] sm:%s286]
                %308 = vst [vmem:[%s294 + $0x30] sm:%s286] %v307
                %v309 = vld [vmem:[%s293 + $0xe0] sm:%s286]
                %310 = vst [vmem:[%s294 + $0x38] sm:%s286] %v309
                %v311 = vld [vmem:[%s293 + $0x100] sm:%s286]
                %312 = vst [vmem:[%s294 + $0x40] sm:%s286] %v311
                %v313 = vld [vmem:[%s293 + $0x120] sm:%s286]
                %314 = vst [vmem:[%s294 + $0x48] sm:%s286] %v313
                %v315 = vld [vmem:[%s293 + $0x140] sm:%s286]
                %316 = vst [vmem:[%s294 + $0x50] sm:%s286] %v315
                %v317 = vld [vmem:[%s293 + $0x160] sm:%s286]
                %318 = vst [vmem:[%s294 + $0x58] sm:%s286] %v317
                %v319 = vld [vmem:[%s293 + $0x180] sm:%s286]
                %320 = vst [vmem:[%s294 + $0x60] sm:%s286] %v319
                %v321 = vld [vmem:[%s293 + $0x1a0] sm:%s286]
                %322 = vst [vmem:[%s294 + $0x68] sm:%s286] %v321
                %v323 = vld [vmem:[%s293 + $0x1c0] sm:%s286]
                %324 = vst [vmem:[%s294 + $0x70] sm:%s286] %v323
                %v325 = vld [vmem:[%s293 + $0x1e0] sm:%s286]
                %326 = vst [vmem:[%s294 + $0x78] sm:%s286] %v325
                %v327 = vld [vmem:[%s293 + $0x200] sm:%s286]
                %328 = vst [vmem:[%s294 + $0x80] sm:%s286] %v327
                %v329 = vld [vmem:[%s293 + $0x220] sm:%s286]
                %330 = vst [vmem:[%s294 + $0x88] sm:%s286] %v329
                %v331 = vld [vmem:[%s293 + $0x240] sm:%s286]
                %332 = vst [vmem:[%s294 + $0x90] sm:%s286] %v331
                %v333 = vld [vmem:[%s293 + $0x260] sm:%s286]
                %334 = vst [vmem:[%s294 + $0x98] sm:%s286] %v333
                %v335 = vld [vmem:[%s293 + $0x280] sm:%s286]
                %336 = vst [vmem:[%s294 + $0xa0] sm:%s286] %v335
                %v337 = vld [vmem:[%s293 + $0x2a0] sm:%s286]
                %338 = vst [vmem:[%s294 + $0xa8] sm:%s286] %v337
                %v339 = vld [vmem:[%s293 + $0x2c0] sm:%s286]
                %340 = vst [vmem:[%s294 + $0xb0] sm:%s286] %v339
                %v341 = vld [vmem:[%s293 + $0x2e0] sm:%s286]
                %342 = vst [vmem:[%s294 + $0xb8] sm:%s286] %v341
                %v343 = vld [vmem:[%s293 + $0x300] sm:%s286]
                %344 = vst [vmem:[%s294 + $0xc0] sm:%s286] %v343
                %v345 = vld [vmem:[%s293 + $0x320] sm:%s286]
                %346 = vst [vmem:[%s294 + $0xc8] sm:%s286] %v345
                %v347 = vld [vmem:[%s293 + $0x340] sm:%s286]
                %348 = vst [vmem:[%s294 + $0xd0] sm:%s286] %v347
                %v349 = vld [vmem:[%s293 + $0x360] sm:%s286]
                %350 = vst [vmem:[%s294 + $0xd8] sm:%s286] %v349
                %v351 = vld [vmem:[%s293 + $0x380] sm:%s286]
                %352 = vst [vmem:[%s294 + $0xe0] sm:%s286] %v351
                %v353 = vld [vmem:[%s293 + $0x3a0] sm:%s286]
                %354 = vst [vmem:[%s294 + $0xe8] sm:%s286] %v353
                %v355 = vld [vmem:[%s293 + $0x3c0] sm:%s286]
                %356 = vst [vmem:[%s294 + $0xf0] sm:%s286] %v355
                %v357 = vld [vmem:[%s293 + $0x3e0] sm:%s286]
                %358 = vst [vmem:[%s294 + $0xf8] sm:%s286] %v357
              $region75: #{tp_linear.1} parent=69 // loop_footer
                %s292 = sadd.s32 1, %s288
              $region76: #{tp_linear.1} parent=69 // loop_footer_branch
                %287 = sbr.rel target = $region72
              $region77: #{tp_linear.1} parent=69 // loop_exit
                _
            $region70: #{tp_linear.1} parent=61 // pred_fallthru
              _
          $region62: #{tp_linear.1} parent=57 // pred_fallthru
            _
          %435 = vnop
        $region58: #{tp_linear.1} parent=15 // pred_fallthru
          _
        // Predicated region
        $region93: #{tp_linear.1} parent=15 // pred_check
          %p436 = pneg %p107
        $region94: #{tp_linear.1} parent=15 // pred_check_branch
          %438 = sbr.rel (%p436) target = $region96
        $region95: #{tp_linear.1} parent=15 // pred_region
          %s439 = smul.u32 2, %s20
          %p440 = scmp.lt.s32.totalorder %s439, 3
          %s441 = scalar_select %p440, %s439, 3
          %s442 = scalar_lea.vmem %s2, %s441
          %s443 = smul.u32 2, %s20
        $region96: #{tp_linear.1} parent=15 // pred_fallthru
          _
      $region16: #{tp_linear.1} parent=5 // pred_fallthru
        _
      %p444 = scmp.le.s32.totalorder 1, %s12
      %p445 = scmp.lt.s32.totalorder %s12, 17
      %p446 = pnand %p444, %p445
      %p447 = pneg %p446
      // Predicated region
      $region97: #{tp_linear.1} parent=5 // pred_check
        _
      $region98: #{tp_linear.1} parent=5 // pred_check_branch
        %449 = sbr.rel (%p446) target = $region100
      $region99: #{tp_linear.1} parent=5 // pred_region
        %s450 = ssub.s32 %s12, 1
        %s451 = sand.u32 %s46, 1
        %s452 = sand.u32 %s46, 1
        %s453 = smul.addr %s452, 128
        %s454 = scalar_lea.vmem [#allocation2], %s453
        // Predicated region
        $region101: #{tp_linear.1} parent=99 // pred_check
          %p455 = pneg %p59
        $region102: #{tp_linear.1} parent=99 // pred_check_branch
          %457 = sbr.rel (%p455) target = $region104
        $region103: #{tp_linear.1} parent=99 // pred_region
          _
        $region104: #{tp_linear.1} parent=99 // pred_fallthru
          _
        %s458 = sand.u32 %s74, 1
        %s459 = sand.u32 %s74, 1
        %s460 = smul.addr %s459, 256
        %s461 = scalar_lea.vmem [#allocation3], %s460
        // Predicated region
        $region105: #{tp_linear.1} parent=99 // pred_check
          %p462 = pneg %p87
        $region106: #{tp_linear.1} parent=99 // pred_check_branch
          %464 = sbr.rel (%p462) target = $region108
        $region107: #{tp_linear.1} parent=99 // pred_region
          _
        $region108: #{tp_linear.1} parent=99 // pred_fallthru
          _
        %s465 = sand.u32 %s46, 1
        %s466 = sand.u32 %s46, 1
        %s467 = smul.addr %s466, 128
        %s468 = scalar_lea.vmem [#allocation2], %s467
        %p469 = pneg %p59
        %p470 = pneg %p56
        %s471 = sand.u32 %s74, 1
        %s472 = sand.u32 %s74, 1
        %s473 = smul.addr %s472, 256
        %s474 = scalar_lea.vmem [#allocation3], %s473
        %p475 = pneg %p87
        %p476 = pneg %p84
        %s477 = smul.u32 2, %s23
        %p478 = scmp.lt.s32.totalorder %s477, 3
        %s479 = scalar_select %p478, %s477, 3
        %s480 = scalar_lea.vmem %s2, %s479
        %p481 = pneg %p113
        %p482 = pneg %p110
        %p483 = pneg %p141
        %p484 = pneg %p138
        %s485 = sand.u32 %s128, 1
        %s486 = scalar_lea.sflag [#allocation5], %s485
        %s487 = sand.u32 %s128, 1
        %s488 = smul.addr %s487, 256
        %s489 = scalar_lea.vmem [#allocation4], %s488
        %s490 = smul.u32 16, %s22
        %s491 = smul.u32 2, %s24
        %s492 = smul.u32 32, %s23
        %s493 = smul.u32 2, %s24
        %s494 = smul.u32 2, %s23
        %p495 = scmp.lt.s32.totalorder %s494, 3
        %s496 = scalar_select %p495, %s494, 3
        %s497 = scalar_lea.vmem %s2, %s496
        %s498 = smul.u32 2, %s23
        %s499 = smul.u32 16, %s22
        %s500 = smul.u32 2, %s23
        %p501 = scmp.eq.s32.totalorder %s24, 0
        // Predicated region
        $region109: #{tp_linear.1} parent=99 // pred_check
          %p502 = pneg %p501
        $region110: #{tp_linear.1} parent=99 // pred_check_branch
          %504 = sbr.rel (%p502) target = $region112
        $region111: #{tp_linear.1} parent=99 // pred_region
          %v505 = vld [vmem:[%s497] sm:$0x3]
          %v507 = vlaneseq
          %v508 = vshrl.u32 %v507, 7
          %v509 = vsub.s32 0, %v508
          %v510 = vrot.slane %v505, %v509
          %v511 = vlaneseq
          %v512 = vshrl.u32 %v511, 7
          %v513 = vsub.s32 1, %v512
          %v514 = vrot.slane %v505, %v513
          %517 = vst [vmem:[%s489] sm:$0xff] %v510
          %518 = vst [vmem:[%s489 + $0x8] sm:$0xff] %v514
          %519 = vst [vmem:[%s489 + $0x10] sm:$0xff] %v510
          %520 = vst [vmem:[%s489 + $0x18] sm:$0xff] %v514
          %521 = vst [vmem:[%s489 + $0x20] sm:$0xff] %v510
          %522 = vst [vmem:[%s489 + $0x28] sm:$0xff] %v514
          %523 = vst [vmem:[%s489 + $0x30] sm:$0xff] %v510
          %524 = vst [vmem:[%s489 + $0x38] sm:$0xff] %v514
          %525 = vst [vmem:[%s489 + $0x40] sm:$0xff] %v510
          %526 = vst [vmem:[%s489 + $0x48] sm:$0xff] %v514
          %527 = vst [vmem:[%s489 + $0x50] sm:$0xff] %v510
          %528 = vst [vmem:[%s489 + $0x58] sm:$0xff] %v514
          %529 = vst [vmem:[%s489 + $0x60] sm:$0xff] %v510
          %530 = vst [vmem:[%s489 + $0x68] sm:$0xff] %v514
          %531 = vst [vmem:[%s489 + $0x70] sm:$0xff] %v510
          %532 = vst [vmem:[%s489 + $0x78] sm:$0xff] %v514
          %533 = vst [vmem:[%s489 + $0x80] sm:$0xff] %v510
          %534 = vst [vmem:[%s489 + $0x88] sm:$0xff] %v514
          %535 = vst [vmem:[%s489 + $0x90] sm:$0xff] %v510
          %536 = vst [vmem:[%s489 + $0x98] sm:$0xff] %v514
          %537 = vst [vmem:[%s489 + $0xa0] sm:$0xff] %v510
          %538 = vst [vmem:[%s489 + $0xa8] sm:$0xff] %v514
          %539 = vst [vmem:[%s489 + $0xb0] sm:$0xff] %v510
          %540 = vst [vmem:[%s489 + $0xb8] sm:$0xff] %v514
          %541 = vst [vmem:[%s489 + $0xc0] sm:$0xff] %v510
          %542 = vst [vmem:[%s489 + $0xc8] sm:$0xff] %v514
          %543 = vst [vmem:[%s489 + $0xd0] sm:$0xff] %v510
          %544 = vst [vmem:[%s489 + $0xd8] sm:$0xff] %v514
          %545 = vst [vmem:[%s489 + $0xe0] sm:$0xff] %v510
          %546 = vst [vmem:[%s489 + $0xe8] sm:$0xff] %v514
          %547 = vst [vmem:[%s489 + $0xf0] sm:$0xff] %v510
          %548 = vst [vmem:[%s489 + $0xf8] sm:$0xff] %v514
        $region112: #{tp_linear.1} parent=99 // pred_fallthru
          _
        %v549 = vld [vmem:[%s489] sm:$0xff]
        %v550 = vld [vmem:[%s489 + $0x8] sm:$0xff]
        %v551 = vld [vmem:[%s489 + $0x10] sm:$0xff]
        %v552 = vld [vmem:[%s489 + $0x18] sm:$0xff]
        %v553 = vld [vmem:[%s489 + $0x20] sm:$0xff]
        %v554 = vld [vmem:[%s489 + $0x28] sm:$0xff]
        %v555 = vld [vmem:[%s489 + $0x30] sm:$0xff]
        %v556 = vld [vmem:[%s489 + $0x38] sm:$0xff]
        %v557 = vld [vmem:[%s489 + $0x40] sm:$0xff]
        %v558 = vld [vmem:[%s489 + $0x48] sm:$0xff]
        %v559 = vld [vmem:[%s489 + $0x50] sm:$0xff]
        %v560 = vld [vmem:[%s489 + $0x58] sm:$0xff]
        %v561 = vld [vmem:[%s489 + $0x60] sm:$0xff]
        %v562 = vld [vmem:[%s489 + $0x68] sm:$0xff]
        %v563 = vld [vmem:[%s489 + $0x70] sm:$0xff]
        %v564 = vld [vmem:[%s489 + $0x78] sm:$0xff]
        %v565 = vld [vmem:[%s489 + $0x80] sm:$0xff]
        %v566 = vld [vmem:[%s489 + $0x88] sm:$0xff]
        %v567 = vld [vmem:[%s489 + $0x90] sm:$0xff]
        %v568 = vld [vmem:[%s489 + $0x98] sm:$0xff]
        %v569 = vld [vmem:[%s489 + $0xa0] sm:$0xff]
        %v570 = vld [vmem:[%s489 + $0xa8] sm:$0xff]
        %v571 = vld [vmem:[%s489 + $0xb0] sm:$0xff]
        %v572 = vld [vmem:[%s489 + $0xb8] sm:$0xff]
        %v573 = vld [vmem:[%s489 + $0xc0] sm:$0xff]
        %v574 = vld [vmem:[%s489 + $0xc8] sm:$0xff]
        %v575 = vld [vmem:[%s489 + $0xd0] sm:$0xff]
        %v576 = vld [vmem:[%s489 + $0xd8] sm:$0xff]
        %v577 = vld [vmem:[%s489 + $0xe0] sm:$0xff]
        %v578 = vld [vmem:[%s489 + $0xe8] sm:$0xff]
        %v579 = vld [vmem:[%s489 + $0xf0] sm:$0xff]
        %v580 = vld [vmem:[%s489 + $0xf8] sm:$0xff]
        %v581 = vld [vmem:[%s454] sm:$0xff]
        %v582 = vld [vmem:[%s454 + $0x8] sm:$0xff]
        %v583 = vld [vmem:[%s454 + $0x10] sm:$0xff]
        %v584 = vld [vmem:[%s454 + $0x18] sm:$0xff]
        %v585 = vld [vmem:[%s454 + $0x20] sm:$0xff]
        %v586 = vld [vmem:[%s454 + $0x28] sm:$0xff]
        %v587 = vld [vmem:[%s454 + $0x30] sm:$0xff]
        %v588 = vld [vmem:[%s454 + $0x38] sm:$0xff]
        %v589 = vld [vmem:[%s454 + $0x40] sm:$0xff]
        %v590 = vld [vmem:[%s454 + $0x48] sm:$0xff]
        %v591 = vld [vmem:[%s454 + $0x50] sm:$0xff]
        %v592 = vld [vmem:[%s454 + $0x58] sm:$0xff]
        %v593 = vld [vmem:[%s454 + $0x60] sm:$0xff]
        %v594 = vld [vmem:[%s454 + $0x68] sm:$0xff]
        %v595 = vld [vmem:[%s454 + $0x70] sm:$0xff]
        %v596 = vld [vmem:[%s454 + $0x78] sm:$0xff]
        %v597 = vld [vmem:[%s461] sm:$0xff]
        %v598 = vld [vmem:[%s461 + $0x8] sm:$0xff]
        %v599 = vld [vmem:[%s461 + $0x10] sm:$0xff]
        %v600 = vld [vmem:[%s461 + $0x18] sm:$0xff]
        %v601 = vld [vmem:[%s461 + $0x20] sm:$0xff]
        %v602 = vld [vmem:[%s461 + $0x28] sm:$0xff]
        %v603 = vld [vmem:[%s461 + $0x30] sm:$0xff]
        %v604 = vld [vmem:[%s461 + $0x38] sm:$0xff]
        %v605 = vld [vmem:[%s461 + $0x40] sm:$0xff]
        %v606 = vld [vmem:[%s461 + $0x48] sm:$0xff]
        %v607 = vld [vmem:[%s461 + $0x50] sm:$0xff]
        %v608 = vld [vmem:[%s461 + $0x58] sm:$0xff]
        %v609 = vld [vmem:[%s461 + $0x60] sm:$0xff]
        %v610 = vld [vmem:[%s461 + $0x68] sm:$0xff]
        %v611 = vld [vmem:[%s461 + $0x70] sm:$0xff]
        %v612 = vld [vmem:[%s461 + $0x78] sm:$0xff]
        %v613 = vld [vmem:[%s461 + $0x80] sm:$0xff]
        %v614 = vld [vmem:[%s461 + $0x88] sm:$0xff]
        %v615 = vld [vmem:[%s461 + $0x90] sm:$0xff]
        %v616 = vld [vmem:[%s461 + $0x98] sm:$0xff]
        %v617 = vld [vmem:[%s461 + $0xa0] sm:$0xff]
        %v618 = vld [vmem:[%s461 + $0xa8] sm:$0xff]
        %v619 = vld [vmem:[%s461 + $0xb0] sm:$0xff]
        %v620 = vld [vmem:[%s461 + $0xb8] sm:$0xff]
        %v621 = vld [vmem:[%s461 + $0xc0] sm:$0xff]
        %v622 = vld [vmem:[%s461 + $0xc8] sm:$0xff]
        %v623 = vld [vmem:[%s461 + $0xd0] sm:$0xff]
        %v624 = vld [vmem:[%s461 + $0xd8] sm:$0xff]
        %v625 = vld [vmem:[%s461 + $0xe0] sm:$0xff]
        %v626 = vld [vmem:[%s461 + $0xe8] sm:$0xff]
        %v627 = vld [vmem:[%s461 + $0xf0] sm:$0xff]
        %v628 = vld [vmem:[%s461 + $0xf8] sm:$0xff]
        %v645 = vunpack.c.l.b16 %v581
        %v646 = vunpack.c.h.b16 %v581
        %v647 = vunpack.c.l.b16 %v582
        %v648 = vunpack.c.h.b16 %v582
        %v649 = vunpack.c.l.b16 %v583
        %v650 = vunpack.c.h.b16 %v583
        %v651 = vunpack.c.l.b16 %v584
        %v652 = vunpack.c.h.b16 %v584
        %v653 = vunpack.c.l.b16 %v585
        %v654 = vunpack.c.h.b16 %v585
        %v655 = vunpack.c.l.b16 %v586
        %v656 = vunpack.c.h.b16 %v586
        %v657 = vunpack.c.l.b16 %v587
        %v658 = vunpack.c.h.b16 %v587
        %v659 = vunpack.c.l.b16 %v588
        %v660 = vunpack.c.h.b16 %v588
        %v661 = vunpack.c.l.b16 %v589
        %v662 = vunpack.c.h.b16 %v589
        %v663 = vunpack.c.l.b16 %v590
        %v664 = vunpack.c.h.b16 %v590
        %v665 = vunpack.c.l.b16 %v591
        %v666 = vunpack.c.h.b16 %v591
        %v667 = vunpack.c.l.b16 %v592
        %v668 = vunpack.c.h.b16 %v592
        %v669 = vunpack.c.l.b16 %v593
        %v670 = vunpack.c.h.b16 %v593
        %v671 = vunpack.c.l.b16 %v594
        %v672 = vunpack.c.h.b16 %v594
        %v673 = vunpack.c.l.b16 %v595
        %v674 = vunpack.c.h.b16 %v595
        %v675 = vunpack.c.l.b16 %v596
        %v676 = vunpack.c.h.b16 %v596
        %v677 = vpack.c.b16 %v647, %v645
        %v678 = vpack.c.b16 %v648, %v646
        %v679 = vpack.c.b16 %v651, %v649
        %v680 = vpack.c.b16 %v652, %v650
        %v681 = vpack.c.b16 %v655, %v653
        %v682 = vpack.c.b16 %v656, %v654
        %v683 = vpack.c.b16 %v659, %v657
        %v684 = vpack.c.b16 %v660, %v658
        %v685 = vpack.c.b16 %v663, %v661
        %v686 = vpack.c.b16 %v664, %v662
        %v687 = vpack.c.b16 %v667, %v665
        %v688 = vpack.c.b16 %v668, %v666
        %v689 = vpack.c.b16 %v671, %v669
        %v690 = vpack.c.b16 %v672, %v670
        %v691 = vpack.c.b16 %v675, %v673
        %v692 = vpack.c.b16 %v676, %v674
        %v741 = vunpack.c.l.b16 %v597
        %v742 = vunpack.c.h.b16 %v597
        %v743 = vunpack.c.l.b16 %v598
        %v744 = vunpack.c.h.b16 %v598
        %v745 = vunpack.c.l.b16 %v599
        %v746 = vunpack.c.h.b16 %v599
        %v747 = vunpack.c.l.b16 %v600
        %v748 = vunpack.c.h.b16 %v600
        %v749 = vunpack.c.l.b16 %v601
        %v750 = vunpack.c.h.b16 %v601
        %v751 = vunpack.c.l.b16 %v602
        %v752 = vunpack.c.h.b16 %v602
        %v753 = vunpack.c.l.b16 %v603
        %v754 = vunpack.c.h.b16 %v603
        %v755 = vunpack.c.l.b16 %v604
        %v756 = vunpack.c.h.b16 %v604
        %v757 = vunpack.c.l.b16 %v605
        %v758 = vunpack.c.h.b16 %v605
        %v759 = vunpack.c.l.b16 %v606
        %v760 = vunpack.c.h.b16 %v606
        %v761 = vunpack.c.l.b16 %v607
        %v762 = vunpack.c.h.b16 %v607
        %v763 = vunpack.c.l.b16 %v608
        %v764 = vunpack.c.h.b16 %v608
        %v765 = vunpack.c.l.b16 %v609
        %v766 = vunpack.c.h.b16 %v609
        %v767 = vunpack.c.l.b16 %v610
        %v768 = vunpack.c.h.b16 %v610
        %v769 = vunpack.c.l.b16 %v611
        %v770 = vunpack.c.h.b16 %v611
        %v771 = vunpack.c.l.b16 %v612
        %v772 = vunpack.c.h.b16 %v612
        %v773 = vunpack.c.l.b16 %v613
        %v774 = vunpack.c.h.b16 %v613
        %v775 = vunpack.c.l.b16 %v614
        %v776 = vunpack.c.h.b16 %v614
        %v777 = vunpack.c.l.b16 %v615
        %v778 = vunpack.c.h.b16 %v615
        %v779 = vunpack.c.l.b16 %v616
        %v780 = vunpack.c.h.b16 %v616
        %v781 = vunpack.c.l.b16 %v617
        %v782 = vunpack.c.h.b16 %v617
        %v783 = vunpack.c.l.b16 %v618
        %v784 = vunpack.c.h.b16 %v618
        %v785 = vunpack.c.l.b16 %v619
        %v786 = vunpack.c.h.b16 %v619
        %v787 = vunpack.c.l.b16 %v620
        %v788 = vunpack.c.h.b16 %v620
        %v789 = vunpack.c.l.b16 %v621
        %v790 = vunpack.c.h.b16 %v621
        %v791 = vunpack.c.l.b16 %v622
        %v792 = vunpack.c.h.b16 %v622
        %v793 = vunpack.c.l.b16 %v623
        %v794 = vunpack.c.h.b16 %v623
        %v795 = vunpack.c.l.b16 %v624
        %v796 = vunpack.c.h.b16 %v624
        %v797 = vunpack.c.l.b16 %v625
        %v798 = vunpack.c.h.b16 %v625
        %v799 = vunpack.c.l.b16 %v626
        %v800 = vunpack.c.h.b16 %v626
        %v801 = vunpack.c.l.b16 %v627
        %v802 = vunpack.c.h.b16 %v627
        %v803 = vunpack.c.l.b16 %v628
        %v804 = vunpack.c.h.b16 %v628
        %v805 = vpack.c.b16 %v743, %v741
        %v806 = vpack.c.b16 %v744, %v742
        %v807 = vpack.c.b16 %v747, %v745
        %v808 = vpack.c.b16 %v748, %v746
        %v809 = vpack.c.b16 %v751, %v749
        %v810 = vpack.c.b16 %v752, %v750
        %v811 = vpack.c.b16 %v755, %v753
        %v812 = vpack.c.b16 %v756, %v754
        %v813 = vpack.c.b16 %v759, %v757
        %v814 = vpack.c.b16 %v760, %v758
        %v815 = vpack.c.b16 %v763, %v761
        %v816 = vpack.c.b16 %v764, %v762
        %v817 = vpack.c.b16 %v767, %v765
        %v818 = vpack.c.b16 %v768, %v766
        %v819 = vpack.c.b16 %v771, %v769
        %v820 = vpack.c.b16 %v772, %v770
        %v821 = vpack.c.b16 %v775, %v773
        %v822 = vpack.c.b16 %v776, %v774
        %v823 = vpack.c.b16 %v779, %v777
        %v824 = vpack.c.b16 %v780, %v778
        %v825 = vpack.c.b16 %v783, %v781
        %v826 = vpack.c.b16 %v784, %v782
        %v827 = vpack.c.b16 %v787, %v785
        %v828 = vpack.c.b16 %v788, %v786
        %v829 = vpack.c.b16 %v791, %v789
        %v830 = vpack.c.b16 %v792, %v790
        %v831 = vpack.c.b16 %v795, %v793
        %v832 = vpack.c.b16 %v796, %v794
        %v833 = vpack.c.b16 %v799, %v797
        %v834 = vpack.c.b16 %v800, %v798
        %v835 = vpack.c.b16 %v803, %v801
        %v836 = vpack.c.b16 %v804, %v802
        %869 = vmatprep.subr.bf16.mxu0 %v820
        %870 = vmatpush1.bf16.xpose.msra.mxu0 %v819
        %871 = vmatprep.subr.bf16.mxu0 %v818
        %872 = vmatpush1.bf16.xpose.msra.mxu0 %v817
        %873 = vmatprep.subr.bf16.mxu0 %v816
        %874 = vmatpush1.bf16.xpose.msra.mxu0 %v815
        %875 = vmatprep.subr.bf16.mxu0 %v814
        %876 = vmatpush1.bf16.xpose.msra.mxu0 %v813
        %877 = vmatprep.subr.bf16.mxu0 %v812
        %878 = vmatpush1.bf16.xpose.msra.mxu0 %v811
        %879 = vmatprep.subr.bf16.mxu0 %v810
        %880 = vmatpush1.bf16.xpose.msra.mxu0 %v809
        %881 = vmatprep.subr.bf16.mxu0 %v808
        %882 = vmatpush1.bf16.xpose.msra.mxu0 %v807
        %883 = vmatprep.subr.bf16.mxu0 %v806
        %884 = vmatpush1.bf16.xpose.msra.mxu0 %v805
        %885 = vmatprep.subr.bf16.mxu0 %v836
        %886 = vmatpush2.bf16.xpose.msra.mxu0 %v835
        %887 = vmatprep.subr.bf16.mxu0 %v834
        %888 = vmatpush2.bf16.xpose.msra.mxu0 %v833
        %889 = vmatprep.subr.bf16.mxu0 %v832
        %890 = vmatpush2.bf16.xpose.msra.mxu0 %v831
        %891 = vmatprep.subr.bf16.mxu0 %v830
        %892 = vmatpush2.bf16.xpose.msra.mxu0 %v829
        %893 = vmatprep.subr.bf16.mxu0 %v828
        %894 = vmatpush2.bf16.xpose.msra.mxu0 %v827
        %895 = vmatprep.subr.bf16.mxu0 %v826
        %896 = vmatpush2.bf16.xpose.msra.mxu0 %v825
        %897 = vmatprep.subr.bf16.mxu0 %v824
        %898 = vmatpush2.bf16.xpose.msra.mxu0 %v823
        %899 = vmatprep.subr.bf16.mxu0 %v822
        %900 = vmatpush2.bf16.xpose.msra.mxu0 %v821
        %901 = vmatprep.mubr.bf16.mxu0 %v678
        %902 = vmatmul.mubr.bf16.gmra.mxu0 %v677
        %v903 = vpop.f32.mrf.mxu0
        %v904 = vadd.f32 0.0, %v903
        %v905 = vpop.f32.mrf.mxu0
        %v906 = vadd.f32 0.0, %v905
        %v907 = vpop.f32.mrf.mxu0
        %v908 = vadd.f32 0.0, %v907
        %v909 = vpop.f32.mrf.mxu0
        %v910 = vadd.f32 0.0, %v909
        %911 = vmatprep.mubr.bf16.mxu0 %v680
        %912 = vmatmul.mubr.bf16.gmra.mxu0 %v679
        %v913 = vpop.f32.mrf.mxu0
        %v914 = vadd.f32 0.0, %v913
        %v915 = vpop.f32.mrf.mxu0
        %v916 = vadd.f32 0.0, %v915
        %v917 = vpop.f32.mrf.mxu0
        %v918 = vadd.f32 0.0, %v917
        %v919 = vpop.f32.mrf.mxu0
        %v920 = vadd.f32 0.0, %v919
        %921 = vmatprep.mubr.bf16.mxu0 %v682
        %922 = vmatmul.mubr.bf16.gmra.mxu0 %v681
        %v923 = vpop.f32.mrf.mxu0
        %v924 = vadd.f32 0.0, %v923
        %v925 = vpop.f32.mrf.mxu0
        %v926 = vadd.f32 0.0, %v925
        %v927 = vpop.f32.mrf.mxu0
        %v928 = vadd.f32 0.0, %v927
        %v929 = vpop.f32.mrf.mxu0
        %v930 = vadd.f32 0.0, %v929
        %931 = vmatprep.mubr.bf16.mxu0 %v684
        %932 = vmatmul.mubr.bf16.gmra.mxu0 %v683
        %v933 = vpop.f32.mrf.mxu0
        %v934 = vadd.f32 0.0, %v933
        %v935 = vpop.f32.mrf.mxu0
        %v936 = vadd.f32 0.0, %v935
        %v937 = vpop.f32.mrf.mxu0
        %v938 = vadd.f32 0.0, %v937
        %v939 = vpop.f32.mrf.mxu0
        %v940 = vadd.f32 0.0, %v939
        %941 = vmatprep.mubr.bf16.mxu0 %v686
        %942 = vmatmul.mubr.bf16.gmra.mxu0 %v685
        %v943 = vpop.f32.mrf.mxu0
        %v944 = vadd.f32 0.0, %v943
        %v945 = vpop.f32.mrf.mxu0
        %v946 = vadd.f32 0.0, %v945
        %v947 = vpop.f32.mrf.mxu0
        %v948 = vadd.f32 0.0, %v947
        %v949 = vpop.f32.mrf.mxu0
        %v950 = vadd.f32 0.0, %v949
        %951 = vmatprep.mubr.bf16.mxu0 %v688
        %952 = vmatmul.mubr.bf16.gmra.mxu0 %v687
        %v953 = vpop.f32.mrf.mxu0
        %v954 = vadd.f32 0.0, %v953
        %v955 = vpop.f32.mrf.mxu0
        %v956 = vadd.f32 0.0, %v955
        %v957 = vpop.f32.mrf.mxu0
        %v958 = vadd.f32 0.0, %v957
        %v959 = vpop.f32.mrf.mxu0
        %v960 = vadd.f32 0.0, %v959
        %961 = vmatprep.mubr.bf16.mxu0 %v690
        %962 = vmatmul.mubr.bf16.gmra.mxu0 %v689
        %v963 = vpop.f32.mrf.mxu0
        %v964 = vadd.f32 0.0, %v963
        %v965 = vpop.f32.mrf.mxu0
        %v966 = vadd.f32 0.0, %v965
        %v967 = vpop.f32.mrf.mxu0
        %v968 = vadd.f32 0.0, %v967
        %v969 = vpop.f32.mrf.mxu0
        %v970 = vadd.f32 0.0, %v969
        %971 = vmatprep.mubr.bf16.mxu0 %v692
        %972 = vmatmul.mubr.bf16.gmra.mxu0 %v691
        %v973 = vpop.f32.mrf.mxu0
        %v974 = vadd.f32 0.0, %v973
        %v975 = vpop.f32.mrf.mxu0
        %v976 = vadd.f32 0.0, %v975
        %v977 = vpop.f32.mrf.mxu0
        %v978 = vadd.f32 0.0, %v977
        %v979 = vpop.f32.mrf.mxu0
        %v980 = vadd.f32 0.0, %v979
        %981 = vdwg.mxu0
        %v982 = vadd.f32 %v549, %v904
        %v983 = vadd.f32 %v550, %v906
        %v984 = vadd.f32 %v551, %v908
        %v985 = vadd.f32 %v552, %v910
        %v986 = vadd.f32 %v553, %v914
        %v987 = vadd.f32 %v554, %v916
        %v988 = vadd.f32 %v555, %v918
        %v989 = vadd.f32 %v556, %v920
        %v990 = vadd.f32 %v557, %v924
        %v991 = vadd.f32 %v558, %v926
        %v992 = vadd.f32 %v559, %v928
        %v993 = vadd.f32 %v560, %v930
        %v994 = vadd.f32 %v561, %v934
        %v995 = vadd.f32 %v562, %v936
        %v996 = vadd.f32 %v563, %v938
        %v997 = vadd.f32 %v564, %v940
        %v998 = vadd.f32 %v565, %v944
        %v999 = vadd.f32 %v566, %v946
        %v1000 = vadd.f32 %v567, %v948
        %v1001 = vadd.f32 %v568, %v950
        %v1002 = vadd.f32 %v569, %v954
        %v1003 = vadd.f32 %v570, %v956
        %v1004 = vadd.f32 %v571, %v958
        %v1005 = vadd.f32 %v572, %v960
        %v1006 = vadd.f32 %v573, %v964
        %v1007 = vadd.f32 %v574, %v966
        %v1008 = vadd.f32 %v575, %v968
        %v1009 = vadd.f32 %v576, %v970
        %v1010 = vadd.f32 %v577, %v974
        %v1011 = vadd.f32 %v578, %v976
        %v1012 = vadd.f32 %v579, %v978
        %v1013 = vadd.f32 %v580, %v980
        %1014 = vst [vmem:[%s489] sm:$0xff] %v982
        %1015 = vst [vmem:[%s489 + $0x8] sm:$0xff] %v983
        %1016 = vst [vmem:[%s489 + $0x10] sm:$0xff] %v984
        %1017 = vst [vmem:[%s489 + $0x18] sm:$0xff] %v985
        %1018 = vst [vmem:[%s489 + $0x20] sm:$0xff] %v986
        %1019 = vst [vmem:[%s489 + $0x28] sm:$0xff] %v987
        %1020 = vst [vmem:[%s489 + $0x30] sm:$0xff] %v988
        %1021 = vst [vmem:[%s489 + $0x38] sm:$0xff] %v989
        %1022 = vst [vmem:[%s489 + $0x40] sm:$0xff] %v990
        %1023 = vst [vmem:[%s489 + $0x48] sm:$0xff] %v991
        %1024 = vst [vmem:[%s489 + $0x50] sm:$0xff] %v992
        %1025 = vst [vmem:[%s489 + $0x58] sm:$0xff] %v993
        %1026 = vst [vmem:[%s489 + $0x60] sm:$0xff] %v994
        %1027 = vst [vmem:[%s489 + $0x68] sm:$0xff] %v995
        %1028 = vst [vmem:[%s489 + $0x70] sm:$0xff] %v996
        %1029 = vst [vmem:[%s489 + $0x78] sm:$0xff] %v997
        %1030 = vst [vmem:[%s489 + $0x80] sm:$0xff] %v998
        %1031 = vst [vmem:[%s489 + $0x88] sm:$0xff] %v999
        %1032 = vst [vmem:[%s489 + $0x90] sm:$0xff] %v1000
        %1033 = vst [vmem:[%s489 + $0x98] sm:$0xff] %v1001
        %1034 = vst [vmem:[%s489 + $0xa0] sm:$0xff] %v1002
        %1035 = vst [vmem:[%s489 + $0xa8] sm:$0xff] %v1003
        %1036 = vst [vmem:[%s489 + $0xb0] sm:$0xff] %v1004
        %1037 = vst [vmem:[%s489 + $0xb8] sm:$0xff] %v1005
        %1038 = vst [vmem:[%s489 + $0xc0] sm:$0xff] %v1006
        %1039 = vst [vmem:[%s489 + $0xc8] sm:$0xff] %v1007
        %1040 = vst [vmem:[%s489 + $0xd0] sm:$0xff] %v1008
        %1041 = vst [vmem:[%s489 + $0xd8] sm:$0xff] %v1009
        %1042 = vst [vmem:[%s489 + $0xe0] sm:$0xff] %v1010
        %1043 = vst [vmem:[%s489 + $0xe8] sm:$0xff] %v1011
        %1044 = vst [vmem:[%s489 + $0xf0] sm:$0xff] %v1012
        %1045 = vst [vmem:[%s489 + $0xf8] sm:$0xff] %v1013
        %s1046 = sand.u32 %s128, 1
        %s1047 = scalar_lea.sflag [#allocation5], %s1046
        %s1048 = sand.u32 %s128, 1
        %s1049 = smul.addr %s1048, 256
        %s1050 = scalar_lea.vmem [#allocation4], %s1049
        // Predicated region
        $region113: #{tp_linear.1} parent=99 // pred_check
          %p1051 = pneg %p138
        $region114: #{tp_linear.1} parent=99 // pred_check_branch
          %1053 = sbr.rel (%p1051) target = $region116
        $region115: #{tp_linear.1} parent=99 // pred_region
          %s1054 = smul.u32 16, %s22
          %s1055 = smul.u32 2, %s23
          %s1057 = ssub.s32 4096, 4096
          %1058 = vsyncadd %s1047, %s1057
          %s1059 = smul.addr %s1054, 4
          %s1060 = sadd.s32 %s1055, %s1059
          %s1061 = smul.addr %s1060, 128
          %s1062 = scalar_lea.hbm %s3, %s1061
          %s1063 = sshll.u32 %s1050, 4
          %s1064 = int_to_ptr.vmem [resolvable:$true] %s1063
          %1069 = dma.vmem_to_hbm [thread:$0]  %s1064, 4096, %s1062, %s1047, 256, 512, 16
        $region116: #{tp_linear.1} parent=99 // pred_fallthru
          _
      $region100: #{tp_linear.1} parent=5 // pred_fallthru
        _
      %p1070 = scmp.le.s32.totalorder 2, %s12
      // Predicated region
      $region117: #{tp_linear.1} parent=5 // pred_check
        %p1071 = pneg %p1070
      $region118: #{tp_linear.1} parent=5 // pred_check_branch
        %1073 = sbr.rel (%p1071) target = $region120
      $region119: #{tp_linear.1} parent=5 // pred_region
        %s1074 = ssub.s32 %s12, 2
        // Predicated region
        $region121: #{tp_linear.1} parent=119 // pred_check
          %p1075 = pneg %p144
        $region122: #{tp_linear.1} parent=119 // pred_check_branch
          %1077 = sbr.rel (%p1075) target = $region124
        $region123: #{tp_linear.1} parent=119 // pred_region
          %s1078 = sand.u32 %s129, 1
          %s1079 = scalar_lea.sflag [#allocation5], %s1078
          %s1080 = sand.u32 %s129, 1
          %s1081 = smul.addr %s1080, 256
          %s1082 = scalar_lea.vmem [#allocation4], %s1081
          %1083 = dma.done %s1079, 4096
        $region124: #{tp_linear.1} parent=119 // pred_fallthru
          _
      $region120: #{tp_linear.1} parent=5 // pred_fallthru
        _
    $region6: #{tp_linear.1} parent=1 // loop_footer
      %s16 = sadd.s32 1, %s12
    $region7: #{tp_linear.1} parent=1 // loop_footer_branch
      %11 = sbr.rel target = $region3
    $region8: #{tp_linear.1} parent=1 // loop_exit
      _
    %1084 = vsyncpa [#allocation5], 1
    %s1085 = scalar_lea.sflag [#allocation5], 1
    %1086 = vsyncpa %s1085, 1

</llo_original>
